<compile_context>
chip_gen: v7x
topology: tpu7x:2x2x1
jax: 0.10.0
libtpu: 0.0.40
codegen_flags: <defaults>
</compile_context>

<pallas_src>
import functools

import jax
import jax.numpy as jnp
from jax.experimental import pallas as pl
from jax.experimental.pallas import tpu as pltpu


def _round_up(x, m):
    return (x + m - 1) // m * m


def _largest_divisor_leq(n, cap):
    cap = max(1, min(n, cap))
    for d in range(cap, 0, -1):
        if n % d == 0:
            return d
    return 1


def _vmem_capacity_bytes():
    """Per-generation VMEM capacity (128 MiB v5e/v6e, 64 MiB v7x); conservative fallback."""
    try:
        info = pltpu.get_tpu_info()
        for attr in ("vmem_capacity_bytes", "vmem_bytes", "vmem_size_bytes"):
            v = getattr(info, attr, None)
            if v:
                return int(v)
    except Exception:
        pass
    return 64 * 1024 * 1024  # v7x-sized fallback: safe on every generation


def _pick_tiles(batch, nk, per_lane_bytes, block_budget, user_tile_m=None, user_bt=None):
    """Pick (batch-pack factor, lane tile) so one streamed block ~= block_budget bytes."""
    nk_pad = _round_up(max(nk, 1), 128)
    target_lanes = max(128, block_budget // max(per_lane_bytes, 1))
    if user_bt is not None:
        assert batch % user_bt == 0, "batch_block must divide the batch size"
        bt = int(user_bt)
    elif batch >= 2 and target_lanes >= 2 * nk_pad:
        # Small NK: pack whole batches per block (contiguous in (B, Cin, NK) layout),
        # but keep >= 2 batch-blocks so the axis can still megacore-shard on v7x.
        want = min(target_lanes // nk_pad, max(1, batch // 2))
        bt = _largest_divisor_leq(batch, int(want))
    else:
        bt = 1
    if user_tile_m is not None:
        tile_m = min(nk_pad, _round_up(int(user_tile_m), 128))
    else:
        tile_m = min(nk_pad, max(128, (target_lanes // bt) // 128 * 128))
    return bt, tile_m


# ---------------------------------------------------------------------------
# Pass 1 (bn=True only): per-partition input statistics.
#   grid = (num_batch_blocks [parallel], num_lane_tiles [arbitrary])
#   Per partition (VMEM-resident accumulators over the lane-tile axis):
#     mu0  (Cin,1)   mean of the partition's first tile (shift for stability)
#     ssum (Cin,1)   sum of (x - mu0)
#     gram (Cin,Cin) sum of (x - mu0)(x - mu0)^T
# ---------------------------------------------------------------------------
def _stats_kernel(x_ref, mu0_ref, sum_ref, gram_ref, *, nk, tile_m, bt, cin, gram_dtype):
    m = pl.program_id(1)
    partial = (nk % tile_m) != 0            # static: last tile has padded lanes

    x = x_ref[...].astype(jnp.float32)      # (bt, Cin, tile_m)
    if partial:
        lane = jax.lax.broadcasted_iota(jnp.int32, x.shape, 2)
        valid = (m * tile_m + lane) < nk

    @pl.when(m == 0)
    def _():
        x0 = jnp.where(valid, x, 0.0) if partial else x
        count0 = bt * min(tile_m, nk)       # valid samples in the first tile (static)
        mu0_ref[0] = jnp.sum(jnp.sum(x0, axis=2, keepdims=True), axis=0) * (1.0 / count0)
        sum_ref[...] = jnp.zeros_like(sum_ref)
        gram_ref[...] = jnp.zeros_like(gram_ref)

    xs = x - mu0_ref[0][None]               # near-centered samples (numerical stability)
    if partial:
        xs = jnp.where(valid, xs, 0.0)      # padded lanes contribute nothing

    sum_ref[0] += jnp.sum(jnp.sum(xs, axis=2, keepdims=True), axis=0)

    # Gram fed to the MXU in compute dtype (bf16 by default) so pass 1 stays
    # HBM-bound on v5e/v6e; mu0-centering protects accuracy, accumulation is f32.
    xs_c = xs.astype(gram_dtype)
    g = jnp.zeros((cin, cin), jnp.float32)
    for i in range(bt):                     # bt is small & static
        g += jax.lax.dot_general(xs_c[i], xs_c[i], (((1,), (1,)), ((), ())),
                                 preferred_element_type=jnp.float32)
    gram_ref[0] += g


# ---------------------------------------------------------------------------
# Pass 2: fused 1x1 conv (+ folded BN affine) + LeakyReLU, tiled & pipelined.
# ---------------------------------------------------------------------------
def _apply_kernel(x_ref, w_ref, b_ref, o_ref, *, use_act, slope, bt):
    w = w_ref[...]                          # (Cout, Cin), pre-cast to compute dtype
    bias = b_ref[...]                       # (Cout, 1) f32, lane-broadcast
    for i in range(bt):                     # bt is small & static
        x = x_ref[i].astype(w.dtype)        # (Cin, tile_m); no-op when caller feeds bf16
        y = jnp.dot(w, x, preferred_element_type=jnp.float32)   # MXU, f32 accumulation
        y = y + bias
        if use_act:
            if 0.0 < slope < 1.0:
                y = jnp.maximum(y, slope * y)       # LeakyReLU: one mul+max on the VPU
            else:
                y = jnp.where(y > 0, y, slope * y)
        # NOTE: lanes past NK in the last partial tile hold padded garbage; Pallas
        # clips the partial output block on writeback, so no mask is needed here.
        o_ref[i] = y.astype(o_ref.dtype)    # lane-dense store


def shared_mlp_forward(x, conv_w, conv_b, bn_gamma=None, bn_beta=None, *,
                       bn=True, use_act=True, negative_slope=0.2, eps=1e-6,
                       compute_dtype=jnp.bfloat16, out_dtype=None,
                       tile_m=None, batch_block=None):
    """SharedMLP forward: 1x1 Conv2d(+bias) -> [train-mode BN] -> [LeakyReLU].

    x: (B, Cin, N, K) NCHW (f32 or bf16; bf16 halves read traffic).
    conv_w: (Cout, Cin, 1, 1).  Returns (B, Cout, N, K) in out_dtype (default x.dtype).
    """
    B, Cin, N, K = x.shape
    Cout = conv_w.shape[0]
    NK = N * K
    M = B * NK
    out_dtype = x.dtype if out_dtype is None else jnp.dtype(out_dtype)

    # Free, contiguous reshape: no HBM transpose on x or the output.
    x3 = x.reshape(B, Cin, NK)
    w2 = conv_w.reshape(Cout, Cin).astype(jnp.float32)
    b2 = conv_b.reshape(Cout, 1).astype(jnp.float32)

    # Per-generation VMEM budget: one block ~ VMEM/4, double-buffered ~ VMEM/2.
    vmem_cap = _vmem_capacity_bytes()
    vmem_limit = min(vmem_cap * 3 // 4, 100 * 1024 * 1024)
    block_budget = vmem_cap // 4

    x_bytes = jnp.dtype(x.dtype).itemsize
    o_bytes = jnp.dtype(out_dtype).itemsize

    if bn:
        # ---------------- Pass 1: per-partition input statistics. ----------------
        # Only the x block streams here, so its tiles are budgeted on Cin alone
        # (larger tiles than the apply pass for the same VMEM).
        bt_s, tm_s = _pick_tiles(B, NK, Cin * x_bytes, block_budget)
        nb_s = B // bt_s
        mu0_p, ssum_p, gram_p = pl.pallas_call(
            functools.partial(_stats_kernel, nk=NK, tile_m=tm_s, bt=bt_s,
                              cin=Cin, gram_dtype=compute_dtype),
            out_shape=(jax.ShapeDtypeStruct((nb_s, Cin, 1), jnp.float32),
                       jax.ShapeDtypeStruct((nb_s, Cin, 1), jnp.float32),
                       jax.ShapeDtypeStruct((nb_s, Cin, Cin), jnp.float32)),
            grid=(nb_s, pl.cdiv(NK, tm_s)),
            in_specs=[pl.BlockSpec((bt_s, Cin, tm_s), lambda bb, m: (bb, 0, m))],
            out_specs=(pl.BlockSpec((1, Cin, 1), lambda bb, m: (bb, 0, 0)),
                       pl.BlockSpec((1, Cin, 1), lambda bb, m: (bb, 0, 0)),
                       pl.BlockSpec((1, Cin, Cin), lambda bb, m: (bb, 0, 0))),
            compiler_params=pltpu.CompilerParams(
                # Batch-block axis -> independent per-partition outputs: "parallel"
                # (megacore-shards pass 1 on v7x).  Lane-tile axis accumulates.
                dimension_semantics=("parallel", "arbitrary"),
                vmem_limit_bytes=vmem_limit),
        )(x3)

        # Combine partition partials + fold BN into the conv (tiny f32 math in JAX).
        cnt = float(bt_s * NK)                                 # samples per partition
        mean_x = jnp.sum(cnt * mu0_p + ssum_p, axis=0) / M     # (Cin, 1)
        d = mu0_p - mean_x[None]                               # (nb, Cin, 1)
        dT = jnp.swapaxes(d, 1, 2)
        sT = jnp.swapaxes(ssum_p, 1, 2)
        # Sum_{i in p} (x - mean)(x - mean)^T, re-centered from each partition's mu0.
        second = gram_p + ssum_p * dT + d * sT + cnt * (d * dT)
        cov_x = jnp.sum(second, axis=0) / M                    # biased covariance of x
        var_y = jnp.maximum(jnp.sum((w2 @ cov_x) * w2, axis=1, keepdims=True), 0.0)
        gamma = bn_gamma.reshape(Cout, 1).astype(jnp.float32)
        beta = bn_beta.reshape(Cout, 1).astype(jnp.float32)
        scale = gamma * jax.lax.rsqrt(var_y + eps)
        w_eff = scale * w2                                     # BN scale folded into W
        # Conv bias cancels under BN mean subtraction; only the folded shift survives.
        b_eff = beta - scale * (w2 @ mean_x)
    else:
        w_eff, b_eff = w2, b2

    # ------------- Pass 2: fused, tiled, pipelined matmul + epilogue. -------------
    bt_a, tm_a = _pick_tiles(B, NK, Cin * x_bytes + Cout * o_bytes, block_budget,
                             tile_m, batch_block)
    out3 = pl.pallas_call(
        functools.partial(_apply_kernel, use_act=use_act,
                          slope=float(negative_slope), bt=bt_a),
        out_shape=jax.ShapeDtypeStruct((B, Cout, NK), out_dtype),
        grid=(B // bt_a, pl.cdiv(NK, tm_a)),
        in_specs=[
            pl.BlockSpec((bt_a, Cin, tm_a), lambda bb, m: (bb, 0, m)),
            pl.BlockSpec((Cout, Cin), lambda bb, m: (0, 0)),
            pl.BlockSpec((Cout, 1), lambda bb, m: (0, 0)),
        ],
        out_specs=pl.BlockSpec((bt_a, Cout, tm_a), lambda bb, m: (bb, 0, m)),
        compiler_params=pltpu.CompilerParams(
            # Independent output tiles -> both axes parallel (v7x 2-TC sharding).
            dimension_semantics=("parallel", "parallel"),
            vmem_limit_bytes=vmem_limit),
    )(x3, w_eff.astype(compute_dtype), b_eff.astype(jnp.float32))

    return out3.reshape(B, Cout, N, K)


def _reference(x, conv_w, conv_b, bn_gamma, bn_beta, *, bn, use_act, slope, eps):
    # Pure-JAX reference mirroring PyTorch train-mode semantics.
    Cout, Cin = conv_w.shape[0], conv_w.shape[1]
    y = jnp.einsum("oc,bcnk->bonk", conv_w.reshape(Cout, Cin), x.astype(jnp.float32))
    y = y + conv_b.reshape(1, Cout, 1, 1)
    if bn:
        mean = jnp.mean(y, axis=(0, 2, 3), keepdims=True)
        var = jnp.mean((y - mean) ** 2, axis=(0, 2, 3), keepdims=True)
        y = (y - mean) / jnp.sqrt(var + eps)
        y = y * bn_gamma.reshape(1, Cout, 1, 1) + bn_beta.reshape(1, Cout, 1, 1)
    if use_act:
        y = jnp.where(y > 0, y, slope * y)
    return y


if __name__ == "__main__":
    key = jax.random.PRNGKey(0)

    # ---- Case 1: default small shape, f32 MXU path (tight tolerance). ----
    B, Cin, Cout, N, K = 2, 4, 8, 16, 16
    k_x, k_w, k_b, k_g, k_be = jax.random.split(key, 5)
    x = jax.random.normal(k_x, (B, Cin, N, K), dtype=jnp.float32)
    conv_w = jax.random.normal(k_w, (Cout, Cin, 1, 1), dtype=jnp.float32) * 0.1
    conv_b = jax.random.normal(k_b, (Cout,), dtype=jnp.float32) * 0.1
    bn_gamma = 1.0 + 0.1 * jax.random.normal(k_g, (Cout,), dtype=jnp.float32)
    bn_beta = 0.1 * jax.random.normal(k_be, (Cout,), dtype=jnp.float32)

    ref = _reference(x, conv_w, conv_b, bn_gamma, bn_beta,
                     bn=True, use_act=True, slope=0.2, eps=1e-6)
    out = jax.block_until_ready(shared_mlp_forward(
        x, conv_w, conv_b, bn_gamma, bn_beta,
        bn=True, use_act=True, negative_slope=0.2, eps=1e-6,
        compute_dtype=jnp.float32))
    assert out.shape == (B, Cout, N, K)
    assert jnp.allclose(out, ref, atol=2e-4, rtol=2e-4), "f32 path mismatch vs reference"

    # ---- Case 2: odd shapes + explicit tiling (partial lane tiles, batch packing). ----
    B2, Cin2, Cout2, N2, K2 = 4, 6, 5, 12, 16     # NK = 192 (not a multiple of 128)
    kk = jax.random.split(jax.random.PRNGKey(1), 5)
    x2 = jax.random.normal(kk[0], (B2, Cin2, N2, K2), dtype=jnp.float32)
    w2_ = jax.random.normal(kk[1], (Cout2, Cin2, 1, 1), dtype=jnp.float32) * 0.2
    b2_ = jax.random.normal(kk[2], (Cout2,), dtype=jnp.float32) * 0.1
    g2_ = 1.0 + 0.1 * jax.random.normal(kk[3], (Cout2,), dtype=jnp.float32)
    be2_ = 0.1 * jax.random.normal(kk[4], (Cout2,), dtype=jnp.float32)
    ref2 = _reference(x2, w2_, b2_, g2_, be2_, bn=True, use_act=True, slope=0.2, eps=1e-6)
    out2 = jax.block_until_ready(shared_mlp_forward(
        x2, w2_, b2_, g2_, be2_, bn=True, use_act=True, negative_slope=0.2, eps=1e-6,
        compute_dtype=jnp.float32, tile_m=128, batch_block=2))
    assert out2.shape == (B2, Cout2, N2, K2)
    assert jnp.allclose(out2, ref2, atol=3e-4, rtol=3e-4), "partial-tile path mismatch"

    # ---- Case 3: default perf config — bf16 input / MXU / output (loose tolerance). ----
    x_bf16 = x.astype(jnp.bfloat16)
    ref3 = _reference(x_bf16.astype(jnp.float32), conv_w, conv_b, bn_gamma, bn_beta,
                      bn=True, use_act=True, slope=0.2, eps=1e-6)
    out3 = jax.block_until_ready(shared_mlp_forward(
        x_bf16, conv_w, conv_b, bn_gamma, bn_beta,
        bn=True, use_act=True, negative_slope=0.2, eps=1e-6,
        compute_dtype=jnp.bfloat16, out_dtype=jnp.bfloat16))
    assert out3.dtype == jnp.bfloat16
    assert jnp.allclose(out3.astype(jnp.float32), ref3, atol=7e-2, rtol=7e-2), \
        "bf16 path mismatch vs reference"

    # ---- Case 4: bn=False / no activation (plain 1x1 conv + bias). ----
    ref4 = _reference(x, conv_w, conv_b, bn_gamma, bn_beta,
                      bn=False, use_act=False, slope=0.2, eps=1e-6)
    out4 = jax.block_until_ready(shared_mlp_forward(
        x, conv_w, conv_b, bn_gamma, bn_beta,
        bn=False, use_act=False, compute_dtype=jnp.float32))
    assert jnp.allclose(out4, ref4, atol=2e-4, rtol=2e-4), "conv-only mismatch"

    print("KERNEL_OK")
</pallas_src>

<mosaic_0001>
module attributes {stable_mosaic.version = 11 : i64} {
  func.func @_stats_kernel(%arg0: i32, %arg1: i32, %arg2: memref<1x4x256xf32, #tpu.memory_space<vmem>>, %arg3: memref<1x4x1xf32, #tpu.memory_space<vmem>>, %arg4: memref<1x4x1xf32, #tpu.memory_space<vmem>>, %arg5: memref<1x4x4xf32, #tpu.memory_space<vmem>>) attributes {dimension_semantics = [#tpu.dimension_semantics<parallel>, #tpu.dimension_semantics<arbitrary>], iteration_bounds = array<i64: 2, 1>, scalar_prefetch = 0 : i64, scratch_operands = 0 : i64, tpu.core_type = #tpu.core_type<tc>, window_params = [{transform_indices = @transform_0, window_bounds = array<i64: 1, 4, 256>}, {transform_indices = @transform_1, window_bounds = array<i64: 1, 4, 1>}, {transform_indices = @transform_2, window_bounds = array<i64: 1, 4, 1>}, {transform_indices = @transform_3, window_bounds = array<i64: 1, 4, 4>}]} {
    %c0 = arith.constant 0 : index
    %c0_0 = arith.constant 0 : index
    %c0_1 = arith.constant 0 : index
    %0 = vector.load %arg2[%c0, %c0_0, %c0_1] : memref<1x4x256xf32, #tpu.memory_space<vmem>>, vector<1x4x256xf32>
    %c0_i32 = arith.constant 0 : i32
    %1 = arith.cmpi eq, %arg1, %c0_i32 : i32
    %2 = arith.extui %1 : i1 to i32
    %c0_i32_2 = arith.constant 0 : i32
    %3 = arith.cmpi ne, %2, %c0_i32_2 : i32
    scf.if %3 {
      %cst_21 = arith.constant dense<0.000000e+00> : vector<1x4xf32>
      %29 = vector.multi_reduction <add>, %0, %cst_21 [2] : vector<1x4x256xf32> to vector<1x4xf32>
      %30 = vector.shape_cast %29 : vector<1x4xf32> to vector<1x4x1xf32>
      %cst_22 = arith.constant dense<0.000000e+00> : vector<4x1xf32>
      %31 = vector.multi_reduction <add>, %30, %cst_22 [0] : vector<1x4x1xf32> to vector<4x1xf32>
      %cst_23 = arith.constant 3.906250e-03 : f32
      %32 = vector.broadcast %cst_23 : f32 to vector<4x1xf32>
      %33 = arith.mulf %31, %32 : vector<4x1xf32>
      %c0_24 = arith.constant 0 : index
      %c0_25 = arith.constant 0 : index
      %c0_26 = arith.constant 0 : index
      %34 = vector.load %arg3[%c0_24, %c0_25, %c0_26] : memref<1x4x1xf32, #tpu.memory_space<vmem>>, vector<1x4x1xf32>
      %35 = vector.shape_cast %34 : vector<1x4x1xf32> to vector<4x1xf32>
      %36 = vector.shape_cast %33 : vector<4x1xf32> to vector<1x4x1xf32>
      tpu.vector_store %arg3[%c0_24, %c0_25, %c0_26], %36 {strides = array<i32>} : memref<1x4x1xf32, #tpu.memory_space<vmem>>, vector<1x4x1xf32>,
      %cst_27 = arith.constant 0.000000e+00 : f32
      %37 = vector.broadcast %cst_27 : f32 to vector<1x4x1xf32>
      %c0_28 = arith.constant 0 : index
      %c0_29 = arith.constant 0 : index
      %c0_30 = arith.constant 0 : index
      %38 = vector.load %arg4[%c0_28, %c0_29, %c0_30] : memref<1x4x1xf32, #tpu.memory_space<vmem>>, vector<1x4x1xf32>
      tpu.vector_store %arg4[%c0_28, %c0_29, %c0_30], %37 {strides = array<i32>} : memref<1x4x1xf32, #tpu.memory_space<vmem>>, vector<1x4x1xf32>,
      %cst_31 = arith.constant 0.000000e+00 : f32
      %39 = vector.broadcast %cst_31 : f32 to vector<1x4x4xf32>
      %c0_32 = arith.constant 0 : index
      %c0_33 = arith.constant 0 : index
      %c0_34 = arith.constant 0 : index
      %40 = vector.load %arg5[%c0_32, %c0_33, %c0_34] : memref<1x4x4xf32, #tpu.memory_space<vmem>>, vector<1x4x4xf32>
      tpu.vector_store %arg5[%c0_32, %c0_33, %c0_34], %39 {strides = array<i32>} : memref<1x4x4xf32, #tpu.memory_space<vmem>>, vector<1x4x4xf32>,
    } else {
    }
    %c0_3 = arith.constant 0 : index
    %c0_4 = arith.constant 0 : index
    %c0_5 = arith.constant 0 : index
    %4 = vector.load %arg3[%c0_3, %c0_4, %c0_5] : memref<1x4x1xf32, #tpu.memory_space<vmem>>, vector<1x4x1xf32>
    %5 = vector.shape_cast %4 : vector<1x4x1xf32> to vector<4x1xf32>
    %6 = vector.shape_cast %5 : vector<4x1xf32> to vector<1x4x1xf32>
    %7 = vector.broadcast %6 : vector<1x4x1xf32> to vector<1x4x256xf32>
    %8 = arith.subf %0, %7 : vector<1x4x256xf32>
    %c0_6 = arith.constant 0 : index
    %c0_7 = arith.constant 0 : index
    %c0_8 = arith.constant 0 : index
    %9 = vector.load %arg4[%c0_6, %c0_7, %c0_8] : memref<1x4x1xf32, #tpu.memory_space<vmem>>, vector<1x4x1xf32>
    %10 = vector.shape_cast %9 : vector<1x4x1xf32> to vector<4x1xf32>
    %cst = arith.constant dense<0.000000e+00> : vector<1x4xf32>
    %11 = vector.multi_reduction <add>, %8, %cst [2] : vector<1x4x256xf32> to vector<1x4xf32>
    %12 = vector.shape_cast %11 : vector<1x4xf32> to vector<1x4x1xf32>
    %cst_9 = arith.constant dense<0.000000e+00> : vector<4x1xf32>
    %13 = vector.multi_reduction <add>, %12, %cst_9 [0] : vector<1x4x1xf32> to vector<4x1xf32>
    %14 = arith.addf %10, %13 : vector<4x1xf32>
    %c0_10 = arith.constant 0 : index
    %c0_11 = arith.constant 0 : index
    %c0_12 = arith.constant 0 : index
    %15 = vector.load %arg4[%c0_10, %c0_11, %c0_12] : memref<1x4x1xf32, #tpu.memory_space<vmem>>, vector<1x4x1xf32>
    %16 = vector.shape_cast %15 : vector<1x4x1xf32> to vector<4x1xf32>
    %17 = vector.shape_cast %14 : vector<4x1xf32> to vector<1x4x1xf32>
    tpu.vector_store %arg4[%c0_10, %c0_11, %c0_12], %17 {strides = array<i32>} : memref<1x4x1xf32, #tpu.memory_space<vmem>>, vector<1x4x1xf32>,
    %cst_13 = arith.constant 0.000000e+00 : f32
    %18 = vector.broadcast %cst_13 : f32 to vector<4x4xf32>
    %19 = vector.shape_cast %8 : vector<1x4x256xf32> to vector<4x256xf32>
    %20 = vector.shape_cast %8 : vector<1x4x256xf32> to vector<4x256xf32>
    %cst_14 = arith.constant dense<0.000000e+00> : vector<4x4xf32>
    %21 = tpu.matmul %19, %20, %cst_14 {dimension_numbers = #tpu.dot_dimension_numbers<[1], [1], [0], [0], [0, 0, 1, 0], [], []>} : vector<4x256xf32>, vector<4x256xf32>, vector<4x4xf32> -> vector<4x4xf32>
    %22 = arith.addf %18, %21 : vector<4x4xf32>
    %c0_15 = arith.constant 0 : index
    %c0_16 = arith.constant 0 : index
    %c0_17 = arith.constant 0 : index
    %23 = vector.load %arg5[%c0_15, %c0_16, %c0_17] : memref<1x4x4xf32, #tpu.memory_space<vmem>>, vector<1x4x4xf32>
    %24 = vector.shape_cast %23 : vector<1x4x4xf32> to vector<4x4xf32>
    %25 = arith.addf %24, %22 : vector<4x4xf32>
    %c0_18 = arith.constant 0 : index
    %c0_19 = arith.constant 0 : index
    %c0_20 = arith.constant 0 : index
    %26 = vector.load %arg5[%c0_18, %c0_19, %c0_20] : memref<1x4x4xf32, #tpu.memory_space<vmem>>, vector<1x4x4xf32>
    %27 = vector.shape_cast %26 : vector<1x4x4xf32> to vector<4x4xf32>
    %28 = vector.shape_cast %25 : vector<4x4xf32> to vector<1x4x4xf32>
    tpu.vector_store %arg5[%c0_18, %c0_19, %c0_20], %28 {strides = array<i32>} : memref<1x4x4xf32, #tpu.memory_space<vmem>>, vector<1x4x4xf32>,
    return
  }
  func.func @transform_0(%arg0: i32, %arg1: i32) -> (i32, i32, i32) {
    %c0_i32 = arith.constant 0 : i32
    %c0_i32_0 = arith.constant 0 : i32
    return %arg0, %c0_i32, %arg1 : i32, i32, i32
  }
  func.func @transform_1(%arg0: i32, %arg1: i32) -> (i32, i32, i32) {
    %c0_i32 = arith.constant 0 : i32
    %c0_i32_0 = arith.constant 0 : i32
    %c0_i32_1 = arith.constant 0 : i32
    return %arg0, %c0_i32, %c0_i32_0 : i32, i32, i32
  }
  func.func @transform_2(%arg0: i32, %arg1: i32) -> (i32, i32, i32) {
    %c0_i32 = arith.constant 0 : i32
    %c0_i32_0 = arith.constant 0 : i32
    %c0_i32_1 = arith.constant 0 : i32
    return %arg0, %c0_i32, %c0_i32_0 : i32, i32, i32
  }
  func.func @transform_3(%arg0: i32, %arg1: i32) -> (i32, i32, i32) {
    %c0_i32 = arith.constant 0 : i32
    %c0_i32_0 = arith.constant 0 : i32
    %c0_i32_1 = arith.constant 0 : i32
    return %arg0, %c0_i32, %c0_i32_0 : i32, i32, i32
  }
}

</mosaic_0001>

<llo_original>
// kernel: tpu_custom_call.1
$region0: #{tpu_custom_call.1}
  #allocation0 [shape = 'u32[]', space=smem, size = 0x4, offset = 0x4, fixed_abs, tag = 'smem constant byte address 0x4 - core index']
  #allocation1 [shape = 'u32[144,128]{1,0:T(1,128)}', space=vmem, size = 0x12000, scoped, tag = 'internal scratch']
  %s0 = inlined_call_operand.hbm [shape: f32[2,4,256], index: 0, kind: input, shape index: {}]
  %s1 = inlined_call_operand.vmem [shape: f32[2,4,1], index: 1, kind: output, shape index: {0}]
  %s2 = inlined_call_operand.vmem [shape: f32[2,4,1], index: 2, kind: output, shape index: {1}]
  %s3 = inlined_call_operand.hbm [shape: f32[2,4,4], index: 3, kind: output, shape index: {2}]
  %4 = xla_tuple %s1, %s2, %s3
  %s5 = sld [smem:[#allocation0]]
  $region61: #{tpu_custom_call.1} parent=0
    _
  %s7 = ssub.s32 1, %s5
  %s8 = scalar_select 0, %s7, %s5
  $region1: #{tpu_custom_call.1} parent=0
    #allocation2 [shape = 'u8[8192]{0}', space=vmem, size = 0x2000, scoped, tag = 'input window, operand 0']
    #allocation3 [shape = 's32[2]{0}', space=sflag, size = 0x8, scoped, tag = 'scoped memory for tpu_custom_call.1']
    #allocation4 [shape = 's32[2]{0}', space=sflag, size = 0x8, scoped, tag = 'scoped memory for tpu_custom_call.1']
    #allocation5 [shape = 'u8[4096]{0}', space=vmem, size = 0x1000, scoped, tag = 'output window, operand 2']
    %9 = vsyncpa [#allocation3], 0
    %s10 = scalar_lea.sflag [#allocation3], 1
    %11 = vsyncpa %s10, 0
    %12 = vsyncpa [#allocation4], 0
    %s13 = scalar_lea.sflag [#allocation4], 1
    %14 = vsyncpa %s13, 0
    loop: start=0, step=1, limit=4
    $region2: #{tpu_custom_call.1} parent=1 // loop_pre_header
      _
    $region3: #{tpu_custom_call.1} parent=1 // loop_header
      %s16 = sphi 0, %s20
      %p17 = scmp.ge.s32.totalorder %s16, 4
      %s23 = sphi 0, %s35
      %s24 = sphi 0, %s31
      %s25 = sphi 0, %s23
      %s26 = sphi 0, %s24
      %s27 = sphi 0, %s25
      %s28 = sphi 0, %s26
      %s40 = sphi 0, %s42
      %s43 = sphi 0, %s40
      %s44 = sphi 0, %s43
      %s60 = sphi 0, %s44
      %s66 = sphi 0, %s68
      %s69 = sphi 0, %s66
      %s70 = sphi 0, %s69
      %s86 = sphi 0, %s70
      %s92 = sphi 0, %s94
      %s95 = sphi 0, %s92
      %s96 = sphi 0, %s95
      %s112 = sphi 0, %s96
      %s118 = sphi 0, %s120
      %s121 = sphi 0, %s118
      %s122 = sphi 0, %s121
      %s138 = sphi 0, %s122
    $region4: #{tpu_custom_call.1} parent=1 // loop_header_branch
      %19 = sbr.rel (%p17) target = $region8
    $region5: #{tpu_custom_call.1} parent=1 // loop_body
      %s21 = ssub.s32 %s16, 1
      %s22 = ssub.s32 %s16, 2
      %s29 = sadd.s32 1, %s24
      %p30 = scmp.ge.s32.totalorder %s29, 1
      %s31 = scalar_select %p30, 0, %s29
      %s32 = sadd.s32 1, %s23
      %s33 = scalar_select %p30, %s32, %s23
      %p34 = scmp.ge.s32.totalorder %s33, 2
      %s35 = scalar_select %p34, 0, %s33
      %s36 = ssub.s32 %s23, %s35
      %s37 = ssub.s32 %s24, %s31
      %s38 = sor.u32 %s36, %s37
      %p39 = scmp.eq.s32.totalorder %s38, 0
      %s41 = sadd.s32 %s40, 1
      %s42 = scalar_select %p39, %s40, %s41
      %p45 = pneg %p39
      %p46 = scmp.eq.s32.totalorder %s16, 1
      %p47 = por %p45, %p46
      %p48 = scmp.ne.s32.totalorder %s40, %s43
      %p49 = scmp.eq.s32.totalorder %s16, 0
      %p50 = por %p48, %p49
      %p51 = scmp.ne.s32.totalorder %s40, %s43
      %p52 = scmp.eq.s32.totalorder %s21, 1
      %p53 = por %p51, %p52
      %p54 = scmp.ne.s32.totalorder %s43, %s44
      %p55 = scmp.eq.s32.totalorder %s21, 0
      %p56 = por %p54, %p55
      %p57 = scmp.ne.s32.totalorder %s43, %s44
      %p58 = scmp.eq.s32.totalorder %s22, 1
      %p59 = por %p57, %p58
      %p61 = scmp.ne.s32.totalorder %s44, %s60
      %p62 = scmp.eq.s32.totalorder %s22, 0
      %p63 = por %p61, %p62
      %s64 = ssub.s32 %s23, %s35
      %p65 = scmp.eq.s32.totalorder %s64, 0
      %s67 = sadd.s32 %s66, 1
      %s68 = scalar_select %p65, %s66, %s67
      %p71 = pneg %p65
      %p72 = scmp.eq.s32.totalorder %s16, 1
      %p73 = por %p71, %p72
      %p74 = scmp.ne.s32.totalorder %s66, %s69
      %p75 = scmp.eq.s32.totalorder %s16, 0
      %p76 = por %p74, %p75
      %p77 = scmp.ne.s32.totalorder %s66, %s69
      %p78 = scmp.eq.s32.totalorder %s21, 1
      %p79 = por %p77, %p78
      %p80 = scmp.ne.s32.totalorder %s69, %s70
      %p81 = scmp.eq.s32.totalorder %s21, 0
      %p82 = por %p80, %p81
      %p83 = scmp.ne.s32.totalorder %s69, %s70
      %p84 = scmp.eq.s32.totalorder %s22, 1
      %p85 = por %p83, %p84
      %p87 = scmp.ne.s32.totalorder %s70, %s86
      %p88 = scmp.eq.s32.totalorder %s22, 0
      %p89 = por %p87, %p88
      %s90 = ssub.s32 %s23, %s35
      %p91 = scmp.eq.s32.totalorder %s90, 0
      %s93 = sadd.s32 %s92, 1
      %s94 = scalar_select %p91, %s92, %s93
      %p97 = pneg %p91
      %p98 = scmp.eq.s32.totalorder %s16, 1
      %p99 = por %p97, %p98
      %p100 = scmp.ne.s32.totalorder %s92, %s95
      %p101 = scmp.eq.s32.totalorder %s16, 0
      %p102 = por %p100, %p101
      %p103 = scmp.ne.s32.totalorder %s92, %s95
      %p104 = scmp.eq.s32.totalorder %s21, 1
      %p105 = por %p103, %p104
      %p106 = scmp.ne.s32.totalorder %s95, %s96
      %p107 = scmp.eq.s32.totalorder %s21, 0
      %p108 = por %p106, %p107
      %p109 = scmp.ne.s32.totalorder %s95, %s96
      %p110 = scmp.eq.s32.totalorder %s22, 1
      %p111 = por %p109, %p110
      %p113 = scmp.ne.s32.totalorder %s96, %s112
      %p114 = scmp.eq.s32.totalorder %s22, 0
      %p115 = por %p113, %p114
      %s116 = ssub.s32 %s23, %s35
      %p117 = scmp.eq.s32.totalorder %s116, 0
      %s119 = sadd.s32 %s118, 1
      %s120 = scalar_select %p117, %s118, %s119
      %p123 = pneg %p117
      %p124 = scmp.eq.s32.totalorder %s16, 1
      %p125 = por %p123, %p124
      %p126 = scmp.ne.s32.totalorder %s118, %s121
      %p127 = scmp.eq.s32.totalorder %s16, 0
      %p128 = por %p126, %p127
      %p129 = scmp.ne.s32.totalorder %s118, %s121
      %p130 = scmp.eq.s32.totalorder %s21, 1
      %p131 = por %p129, %p130
      %p132 = scmp.ne.s32.totalorder %s121, %s122
      %p133 = scmp.eq.s32.totalorder %s21, 0
      %p134 = por %p132, %p133
      %p135 = scmp.ne.s32.totalorder %s121, %s122
      %p136 = scmp.eq.s32.totalorder %s22, 1
      %p137 = por %p135, %p136
      %p139 = scmp.ne.s32.totalorder %s122, %s138
      %p140 = scmp.eq.s32.totalorder %s22, 0
      %p141 = por %p139, %p140
      %p142 = scmp.le.s32.totalorder 1, %s16
      %p143 = scmp.lt.s32.totalorder %s16, 3
      %p144 = pnand %p142, %p143
      %p145 = pneg %p144
      // Predicated region
      $region9: #{tpu_custom_call.1} parent=5 // pred_check
        _
      $region10: #{tpu_custom_call.1} parent=5 // pred_check_branch
        %147 = sbr.rel (%p144) target = $region12
      $region11: #{tpu_custom_call.1} parent=5 // pred_region
        %s148 = ssub.s32 %s16, 1
      $region12: #{tpu_custom_call.1} parent=5 // pred_fallthru
        _
      %p149 = scmp.lt.s32.totalorder %s16, 2
      // Predicated region
      $region13: #{tpu_custom_call.1} parent=5 // pred_check
        %p150 = pneg %p149
      $region14: #{tpu_custom_call.1} parent=5 // pred_check_branch
        %152 = sbr.rel (%p150) target = $region16
      $region15: #{tpu_custom_call.1} parent=5 // pred_region
        // Predicated region
        $region17: #{tpu_custom_call.1} parent=15 // pred_check
          %p153 = pneg %p50
        $region18: #{tpu_custom_call.1} parent=15 // pred_check_branch
          %155 = sbr.rel (%p153) target = $region20
        $region19: #{tpu_custom_call.1} parent=15 // pred_region
          %s156 = sand.u32 %s40, 1
          %s157 = scalar_lea.sflag [#allocation3], %s156
          %s158 = sand.u32 %s40, 1
          %s159 = smul.addr %s158, 8
          %s160 = scalar_lea.vmem [#allocation2], %s159
          %s161 = smul.u32 2, %s24
          %s163 = ssub.s32 128, 128
          %164 = vsyncadd %s157, %s163
          %s165 = smul.addr %s23, 2
          %s166 = sadd.s32 %s161, %s165
          %s167 = smul.addr %s166, 64
          %s168 = scalar_lea.hbm %s0, %s167
          %s170 = sshll.u32 %s160, 4
          %s171 = int_to_ptr.vmem [resolvable:$true] %s170
          %173 = dma.hbm_to_vmem [thread:$0]  %s168, 128, %s171, %s157
        $region20: #{tpu_custom_call.1} parent=15 // pred_fallthru
          _
      $region16: #{tpu_custom_call.1} parent=5 // pred_fallthru
        _
      %p174 = scmp.le.s32.totalorder 1, %s16
      %p175 = scmp.lt.s32.totalorder %s16, 3
      %p176 = pnand %p174, %p175
      %p177 = pneg %p176
      // Predicated region
      $region21: #{tpu_custom_call.1} parent=5 // pred_check
        _
      $region22: #{tpu_custom_call.1} parent=5 // pred_check_branch
        %179 = sbr.rel (%p176) target = $region24
      $region23: #{tpu_custom_call.1} parent=5 // pred_region
        %s180 = ssub.s32 %s16, 1
        %s181 = sand.u32 %s43, 1
        %s182 = scalar_lea.sflag [#allocation3], %s181
        %s183 = sand.u32 %s43, 1
        %s184 = smul.addr %s183, 8
        %s185 = scalar_lea.vmem [#allocation2], %s184
        // Predicated region
        $region25: #{tpu_custom_call.1} parent=23 // pred_check
          %p186 = pneg %p56
        $region26: #{tpu_custom_call.1} parent=23 // pred_check_branch
          %188 = sbr.rel (%p186) target = $region28
        $region27: #{tpu_custom_call.1} parent=23 // pred_region
          %189 = dma.done %s182, 128
        $region28: #{tpu_custom_call.1} parent=23 // pred_fallthru
          _
        %s190 = sand.u32 %s43, 1
        %s191 = scalar_lea.sflag [#allocation3], %s190
        %s192 = sand.u32 %s43, 1
        %s193 = smul.addr %s192, 8
        %s194 = scalar_lea.vmem [#allocation2], %s193
        %p195 = pneg %p56
        %p196 = pneg %p53
        %p197 = pneg %p82
        %p198 = pneg %p79
        %p199 = scmp.lt.s32.totalorder %s25, 1
        %s200 = scalar_select %p199, %s25, 1
        %s201 = smul.addr %s200, 4
        %s202 = scalar_lea.vmem %s1, %s201
        %p203 = pneg %p108
        %p204 = pneg %p105
        %p205 = scmp.lt.s32.totalorder %s25, 1
        %s206 = scalar_select %p205, %s25, 1
        %s207 = smul.addr %s206, 4
        %s208 = scalar_lea.vmem %s2, %s207
        %p209 = pneg %p134
        %p210 = pneg %p131
        %s211 = sand.u32 %s121, 1
        %s212 = scalar_lea.sflag [#allocation4], %s211
        %s213 = sand.u32 %s121, 1
        %s214 = smul.addr %s213, 4
        %s215 = scalar_lea.vmem [#allocation5], %s214
        %s216 = smul.u32 2, %s26
        %p217 = scmp.lt.s32.totalorder %s25, 1
        %s218 = scalar_select %p217, %s25, 1
        %s219 = smul.addr %s218, 4
        %s220 = scalar_lea.vmem %s1, %s219
        %p221 = scmp.lt.s32.totalorder %s25, 1
        %s222 = scalar_select %p221, %s25, 1
        %s223 = smul.addr %s222, 4
        %s224 = scalar_lea.vmem %s2, %s223
        %v225 = vld [vmem:[%s185] sm:$0xff]
        %p226 = scmp.eq.s32.totalorder %s26, 0
        // Predicated region
        $region29: #{tpu_custom_call.1} parent=23 // pred_check
          %p227 = pneg %p226
        $region30: #{tpu_custom_call.1} parent=23 // pred_check_branch
          %229 = sbr.rel (%p227) target = $region32
        $region31: #{tpu_custom_call.1} parent=23 // pred_region
          %v231 = vcombine.high %v225, %v225
          %vm233 = vcmask 1043456
          %v234 = vsel %vm233, %v225, 0.0
          %v235 = vsel %vm233, %v231, 0.0
          %v236 = vadd.f32 %v234, %v235
          %237 = vadd.xlane.f32.xlu0 %v236
          %v238 = vpop.xlane.xlu0 %237
          %v239 = vadd.f32 %v238, 0.0
          %v240 = vmul.f32 %v239, 0.00390625
          %vm241 = vcmask 3072
          %242 = vst.msk [vmem:[%s220] sm:$0xf] %vm241, %v240
          %243 = vst.msk [vmem:[%s224] sm:$0xf] %vm241, 0.0
          %vm244 = vcmask 27648
          %245 = vst.msk [vmem:[%s215] sm:$0xf] %vm244, 0.0
        $region32: #{tpu_custom_call.1} parent=23 // pred_fallthru
          _
        %v246 = vld [vmem:[%s220] sm:$0xf]
        %248 = vset.pattern.permute.xlu0 0
        %249 = vperm.xlu0 %248, %v246
        %v250 = vpop.permute.xlu0 %249
        %v252 = vunpack.c.l.s4 839922192
        %v253 = vunpack.c.0.s8 %v252
        %v254 = vlaneseq
        %v255 = vshrl.u32 %v254, 7
        %v256 = vsub.s32 %v253, %v255
        %v257 = vrot.slane %v250, %v256
        %v259 = vsub.f32 %v225, %v257
        %v260 = vld [vmem:[%s224] sm:$0xf]
        %v262 = vcombine.high %v259, %v259
        %vm264 = vcmask 1043456
        %v265 = vsel %vm264, %v259, 0.0
        %v266 = vsel %vm264, %v262, 0.0
        %v267 = vadd.f32 %v265, %v266
        %268 = vadd.xlane.f32.xlu0 %v267
        %v269 = vpop.xlane.xlu0 %268
        %v270 = vadd.f32 %v269, 0.0
        %v271 = vadd.f32 %v260, %v270
        %vm272 = vcmask 3072
        %273 = vst.msk [vmem:[%s224] sm:$0xf] %vm272, %v271
        %274 = vmatprep.subr.mxu0 %v262
        %275 = vmatpush1.xpose.msra.mxu0 %v259
        %276 = vmatprep.subr.mxu0 0.0
        %277 = vmatpush1.xpose.msra.mxu0 0.0
        %278 = vmatprep.subr.mxu0 0.0
        %279 = vmatpush1.xpose.msra.mxu0 0.0
        %280 = vmatprep.subr.mxu0 0.0
        %281 = vmatpush1.xpose.msra.mxu0 0.0
        %282 = vmatprep.subr.mxu0 0.0
        %283 = vmatpush1.xpose.msra.mxu0 0.0
        %284 = vmatprep.subr.mxu0 0.0
        %285 = vmatpush1.xpose.msra.mxu0 0.0
        %286 = vmatprep.subr.mxu0 0.0
        %287 = vmatpush1.xpose.msra.mxu0 0.0
        %288 = vmatprep.subr.mxu0 0.0
        %289 = vmatpush1.xpose.msra.mxu0 0.0
        %290 = vmatprep.subr.mxu0 0.0
        %291 = vmatpush1.xpose.msra.mxu0 0.0
        %292 = vmatprep.subr.mxu0 0.0
        %293 = vmatpush1.xpose.msra.mxu0 0.0
        %294 = vmatprep.subr.mxu0 0.0
        %295 = vmatpush1.xpose.msra.mxu0 0.0
        %296 = vmatprep.subr.mxu0 0.0
        %297 = vmatpush1.xpose.msra.mxu0 0.0
        %298 = vmatprep.subr.mxu0 0.0
        %299 = vmatpush1.xpose.msra.mxu0 0.0
        %300 = vmatprep.subr.mxu0 0.0
        %301 = vmatpush1.xpose.msra.mxu0 0.0
        %302 = vmatprep.subr.mxu0 0.0
        %303 = vmatpush1.xpose.msra.mxu0 0.0
        %304 = vmatprep.subr.mxu0 0.0
        %305 = vmatpush1.xpose.msra.mxu0 0.0
        %306 = vmatprep.subr.mxu0 0.0
        %307 = vmatpush1.xpose.msra.mxu0 0.0
        %308 = vmatprep.subr.mxu0 0.0
        %309 = vmatpush1.xpose.msra.mxu0 0.0
        %310 = vmatprep.subr.mxu0 0.0
        %311 = vmatpush1.xpose.msra.mxu0 0.0
        %312 = vmatprep.subr.mxu0 0.0
        %313 = vmatpush1.xpose.msra.mxu0 0.0
        %314 = vmatprep.subr.mxu0 0.0
        %315 = vmatpush1.xpose.msra.mxu0 0.0
        %316 = vmatprep.subr.mxu0 0.0
        %317 = vmatpush1.xpose.msra.mxu0 0.0
        %318 = vmatprep.subr.mxu0 0.0
        %319 = vmatpush1.xpose.msra.mxu0 0.0
        %320 = vmatprep.subr.mxu0 0.0
        %321 = vmatpush1.xpose.msra.mxu0 0.0
        %322 = vmatprep.subr.mxu0 0.0
        %323 = vmatpush1.xpose.msra.mxu0 0.0
        %324 = vmatprep.subr.mxu0 0.0
        %325 = vmatpush1.xpose.msra.mxu0 0.0
        %326 = vmatprep.subr.mxu0 0.0
        %327 = vmatpush1.xpose.msra.mxu0 0.0
        %328 = vmatprep.subr.mxu0 0.0
        %329 = vmatpush1.xpose.msra.mxu0 0.0
        %330 = vmatprep.subr.mxu0 0.0
        %331 = vmatpush1.xpose.msra.mxu0 0.0
        %332 = vmatprep.subr.mxu0 0.0
        %333 = vmatpush1.xpose.msra.mxu0 0.0
        %334 = vmatprep.subr.mxu0 0.0
        %335 = vmatpush1.xpose.msra.mxu0 0.0
        %336 = vmatprep.subr.mxu0 0.0
        %337 = vmatpush1.xpose.msra.mxu0 0.0
        %338 = vmatprep.mubr.f32.mxu0 %v262
        %339 = vmatmul.mubr.f32.gmra.mrb[0].mxu0 %v259
        %v340 = vpop.f32.mrb[0].mxu0
        %v341 = vadd.f32 0.0, %v340
        %v342 = vpop.f32.mrb[0].mxu0
        %343 = vdwg.mxu0
        %v344 = vld [vmem:[%s215] sm:$0xf]
        %v345 = vadd.f32 %v344, %v341
        %vm346 = vcmask 27648
        %347 = vst.msk [vmem:[%s215] sm:$0xf] %vm346, %v345
        %p348 = scmp.lt.s32.totalorder %s25, 1
        %s349 = scalar_select %p348, %s25, 1
        %s350 = smul.addr %s349, 4
        %s351 = scalar_lea.vmem %s1, %s350
        %p352 = scmp.lt.s32.totalorder %s25, 1
        %s353 = scalar_select %p352, %s25, 1
        %s354 = smul.addr %s353, 4
        %s355 = scalar_lea.vmem %s2, %s354
        %s356 = sand.u32 %s121, 1
        %s357 = scalar_lea.sflag [#allocation4], %s356
        %s358 = sand.u32 %s121, 1
        %s359 = smul.addr %s358, 4
        %s360 = scalar_lea.vmem [#allocation5], %s359
        // Predicated region
        $region33: #{tpu_custom_call.1} parent=23 // pred_check
          %p361 = pneg %p79
        $region34: #{tpu_custom_call.1} parent=23 // pred_check_branch
          %363 = sbr.rel (%p361) target = $region36
        $region35: #{tpu_custom_call.1} parent=23 // pred_region
          _
        $region36: #{tpu_custom_call.1} parent=23 // pred_fallthru
          _
        // Predicated region
        $region37: #{tpu_custom_call.1} parent=23 // pred_check
          %p364 = pneg %p105
        $region38: #{tpu_custom_call.1} parent=23 // pred_check_branch
          %366 = sbr.rel (%p364) target = $region40
        $region39: #{tpu_custom_call.1} parent=23 // pred_region
          _
        $region40: #{tpu_custom_call.1} parent=23 // pred_fallthru
          _
        // Predicated region
        $region41: #{tpu_custom_call.1} parent=23 // pred_check
          %p367 = pneg %p131
        $region42: #{tpu_custom_call.1} parent=23 // pred_check_branch
          %369 = sbr.rel (%p367) target = $region44
        $region43: #{tpu_custom_call.1} parent=23 // pred_region
          %s371 = ssub.s32 64, 64
          %372 = vsyncadd %s357, %s371
          %s373 = smul.addr %s25, 64
          %s374 = scalar_lea.hbm %s3, %s373
          %s376 = sshll.u32 %s360, 4
          %s377 = int_to_ptr.vmem [resolvable:$true] %s376
          %379 = dma.vmem_to_hbm [thread:$0]  %s377, 64, %s374, %s357
        $region44: #{tpu_custom_call.1} parent=23 // pred_fallthru
          _
      $region24: #{tpu_custom_call.1} parent=5 // pred_fallthru
        _
      %p380 = scmp.le.s32.totalorder 2, %s16
      // Predicated region
      $region45: #{tpu_custom_call.1} parent=5 // pred_check
        %p381 = pneg %p380
      $region46: #{tpu_custom_call.1} parent=5 // pred_check_branch
        %383 = sbr.rel (%p381) target = $region48
      $region47: #{tpu_custom_call.1} parent=5 // pred_region
        %s384 = ssub.s32 %s16, 2
        // Predicated region
        $region49: #{tpu_custom_call.1} parent=47 // pred_check
          %p385 = pneg %p85
        $region50: #{tpu_custom_call.1} parent=47 // pred_check_branch
          %387 = sbr.rel (%p385) target = $region52
        $region51: #{tpu_custom_call.1} parent=47 // pred_region
          %p388 = scmp.lt.s32.totalorder %s27, 1
          %s389 = scalar_select %p388, %s27, 1
          %s390 = smul.addr %s389, 4
          %s391 = scalar_lea.vmem %s1, %s390
        $region52: #{tpu_custom_call.1} parent=47 // pred_fallthru
          _
        // Predicated region
        $region53: #{tpu_custom_call.1} parent=47 // pred_check
          %p392 = pneg %p111
        $region54: #{tpu_custom_call.1} parent=47 // pred_check_branch
          %394 = sbr.rel (%p392) target = $region56
        $region55: #{tpu_custom_call.1} parent=47 // pred_region
          %p395 = scmp.lt.s32.totalorder %s27, 1
          %s396 = scalar_select %p395, %s27, 1
          %s397 = smul.addr %s396, 4
          %s398 = scalar_lea.vmem %s2, %s397
        $region56: #{tpu_custom_call.1} parent=47 // pred_fallthru
          _
        // Predicated region
        $region57: #{tpu_custom_call.1} parent=47 // pred_check
          %p399 = pneg %p137
        $region58: #{tpu_custom_call.1} parent=47 // pred_check_branch
          %401 = sbr.rel (%p399) target = $region60
        $region59: #{tpu_custom_call.1} parent=47 // pred_region
          %s402 = sand.u32 %s122, 1
          %s403 = scalar_lea.sflag [#allocation4], %s402
          %s404 = sand.u32 %s122, 1
          %s405 = smul.addr %s404, 4
          %s406 = scalar_lea.vmem [#allocation5], %s405
          %407 = dma.done %s403, 64
        $region60: #{tpu_custom_call.1} parent=47 // pred_fallthru
          _
      $region48: #{tpu_custom_call.1} parent=5 // pred_fallthru
        _
    $region6: #{tpu_custom_call.1} parent=1 // loop_footer
      %s20 = sadd.s32 1, %s16
    $region7: #{tpu_custom_call.1} parent=1 // loop_footer_branch
      %15 = sbr.rel target = $region3
    $region8: #{tpu_custom_call.1} parent=1 // loop_exit
      _
    %408 = vsyncpa [#allocation3], 1
    %s409 = scalar_lea.sflag [#allocation3], 1
    %410 = vsyncpa %s409, 1
    %411 = vsyncpa [#allocation4], 1
    %s412 = scalar_lea.sflag [#allocation4], 1
    %413 = vsyncpa %s412, 1

</llo_original>
